<compile_context>
chip_gen: v7x
topology: tpu7x:2x2x1
jax: 0.10.0
libtpu: 0.0.40
codegen_flags: <defaults>
</compile_context>

<pallas_src>
import jax
import jax.numpy as jnp
from jax import lax
from jax.experimental import pallas as pl
from jax.experimental.pallas import tpu as pltpu


def _round_up(x, m):
    return -(-x // m) * m


def _make_kernel(num_ops, d, half, use_select_gather):
    def kernel(idx_ref, emb_ref, tab_ref, out_ref):
        tile_n = emb_ref.shape[0]
        idx = idx_ref[...]                                   # (tile_n, 1) int32

        if use_select_gather:
            # Small table: unrolled VPU select chain, no MXU / iota work.
            params = jnp.broadcast_to(tab_ref[0:1, :], (tile_n, d))
            for k in range(1, num_ops):
                params = jnp.where(idx == k, tab_ref[k:k + 1, :], params)
            params = params.astype(jnp.float32)
        else:
            # Large table: one-hot gather on the MXU.  One-hot in the table's
            # dtype (pre-cast once in the wrapper), f32 accumulation.
            ops = lax.broadcasted_iota(jnp.int32, (tile_n, num_ops), 1)
            one_hot = (ops == idx).astype(tab_ref.dtype)
            params = jnp.dot(one_hot, tab_ref[...],
                             preferred_element_type=jnp.float32)

        emb = emb_ref[...].astype(jnp.float32)               # (tile_n, D)
        real_a, imag_a = emb[:, :half], emb[:, half:]
        real_b, imag_b = params[:, :half], params[:, half:]

        out_real = real_a * real_b - imag_a * imag_b
        out_imag = real_a * imag_b + imag_a * real_b

        if half % 128 == 0:
            # Aligned, unmasked (lane-dense) half-width stores.
            out_ref[:, :half] = out_real.astype(out_ref.dtype)
            out_ref[:, half:] = out_imag.astype(out_ref.dtype)
        else:
            # D not 128-aligned (e.g. D < 128): one full-width store.
            out_ref[...] = jnp.concatenate(
                [out_real, out_imag], axis=-1).astype(out_ref.dtype)

    return kernel


def _choose_tile_n(n, d, itemsize):
    # Pipeline buffers: emb-in + out, double-buffered -> 4 * itemsize * d B/row.
    # In-kernel f32 temporaries (upcast emb, gathered params, products)
    # ~= 4 live f32 rows -> 16 * d B/row.
    bytes_per_row = (4 * itemsize + 16) * d
    budget = 16 * 1024 * 1024            # comfortably inside every gen's scoped VMEM
    cap = max(8, (budget // bytes_per_row) // 8 * 8)
    tile = min(1024, cap)
    if n >= 8:
        # Keep >= ~4 grid steps when possible so a multi-TensorCore chip (v7x)
        # can shard the "parallel" grid axis across both cores.
        steps_cap = _round_up(-(-n // 4), 8)
        tile = min(tile, steps_cap)
    else:
        tile = n                         # block equals the full array dim (allowed)
    return max(1, tile)


def complex_diagonal_forward(embeddings, operator_idxs, real, imag, *, tile_n=None):
    """Pallas equivalent of ComplexDiagonalDynamicOperator.forward."""
    orig_shape = embeddings.shape
    d = orig_shape[-1]
    assert d % 2 == 0, "Need even dimension (real/imag halves)"
    half = d // 2
    num_ops = real.shape[0]
    assert real.shape == (num_ops, half) and imag.shape == (num_ops, half)
    assert operator_idxs.shape == orig_shape[:-1]

    emb = embeddings.reshape(-1, d)
    idx = operator_idxs.reshape(-1, 1).astype(jnp.int32)
    n = emb.shape[0]

    if tile_n is None:
        tile_n = _choose_tile_n(n, d, jnp.dtype(embeddings.dtype).itemsize)

    # Small resident parameter table [num_ops, D] = [real | imag], pre-cast
    # once in the wrapper (no per-step astype inside the kernel).
    table = jnp.concatenate([real, imag], axis=-1).astype(embeddings.dtype)

    use_select = num_ops <= 16
    kernel = _make_kernel(num_ops, d, half, use_select)

    grid = (pl.cdiv(n, tile_n),)
    out = pl.pallas_call(
        kernel,
        out_shape=jax.ShapeDtypeStruct((n, d), embeddings.dtype),
        grid_spec=pltpu.PrefetchScalarGridSpec(
            num_scalar_prefetch=0,
            grid=grid,
            in_specs=[
                pl.BlockSpec((tile_n, 1), lambda i: (i, 0)),    # operator idxs
                pl.BlockSpec((tile_n, d), lambda i: (i, 0)),    # embeddings
                # Resident param table (block index constant -> Mosaic skips
                # the re-DMA across grid steps).
                pl.BlockSpec((num_ops, d), lambda i: (0, 0)),
            ],
            out_specs=pl.BlockSpec((tile_n, d), lambda i: (i, 0)),
        ),
        compiler_params=pltpu.CompilerParams(
            dimension_semantics=("parallel",),
            vmem_limit_bytes=32 * 1024 * 1024),
    )(idx, emb, table)

    return out.reshape(orig_shape)


def _reference(embeddings, operator_idxs, real, imag):
    d = embeddings.shape[-1]
    half = d // 2
    real_a = embeddings[..., :half]
    imag_a = embeddings[..., half:]
    real_b = real[operator_idxs]
    imag_b = imag[operator_idxs]
    return jnp.concatenate(
        [real_a * real_b - imag_a * imag_b,
         real_a * imag_b + imag_a * real_b], axis=-1)


if __name__ == "__main__":
    key = jax.random.PRNGKey(0)
    dim = 32
    num_operations = 4

    # ---- case 1: module-default parameters (real=ones, imag=zeros) ----
    k1, k2, k3, k4, k5 = jax.random.split(key, 5)
    emb1 = jax.random.normal(k1, (2, 8, dim), dtype=jnp.float32)
    idx1 = jax.random.randint(k2, (2, 8), 0, num_operations)
    real_default = jnp.ones((num_operations, dim // 2), dtype=jnp.float32)
    imag_default = jnp.zeros((num_operations, dim // 2), dtype=jnp.float32)

    out1 = complex_diagonal_forward(emb1, idx1, real_default, imag_default)
    jax.block_until_ready(out1)
    ref1 = _reference(emb1, idx1, real_default, imag_default)
    assert out1.shape == emb1.shape
    assert jnp.allclose(out1, ref1, atol=1e-5, rtol=1e-5)

    # ---- case 2: random parameters, non-8-aligned row count (ragged tail) ----
    emb2 = jax.random.normal(k3, (3, 5, dim), dtype=jnp.float32)
    idx2 = jax.random.randint(k4, (3, 5), 0, num_operations)
    k5a, k5b = jax.random.split(k5)
    real_rnd = jax.random.normal(k5a, (num_operations, dim // 2), dtype=jnp.float32)
    imag_rnd = jax.random.normal(k5b, (num_operations, dim // 2), dtype=jnp.float32)

    out2 = complex_diagonal_forward(emb2, idx2, real_rnd, imag_rnd)
    jax.block_until_ready(out2)
    ref2 = _reference(emb2, idx2, real_rnd, imag_rnd)
    assert out2.shape == emb2.shape
    assert jnp.allclose(out2, ref2, atol=1e-5, rtol=1e-5)

    print("KERNEL_OK")
</pallas_src>

<mosaic_0001>
module attributes {stable_mosaic.version = 11 : i64} {
  func.func @kernel(%arg0: i32, %arg1: memref<8x1xi32, #tpu.memory_space<vmem>>, %arg2: memref<8x32xf32, #tpu.memory_space<vmem>>, %arg3: memref<4x32xf32, #tpu.memory_space<vmem>>, %arg4: memref<8x32xf32, #tpu.memory_space<vmem>>) attributes {dimension_semantics = [#tpu.dimension_semantics<parallel>], iteration_bounds = array<i64: 2>, scalar_prefetch = 0 : i64, scratch_operands = 0 : i64, tpu.core_type = #tpu.core_type<tc>, window_params = [{transform_indices = @transform_0, window_bounds = array<i64: 8, 1>}, {transform_indices = @transform_1, window_bounds = array<i64: 8, 32>}, {pipeline_mode = #tpu.pipeline_mode<synchronous>, transform_indices = @transform_2, window_bounds = array<i64: 4, 32>}, {transform_indices = @transform_3, window_bounds = array<i64: 8, 32>}]} {
    %c0 = arith.constant 0 : index
    %c0_0 = arith.constant 0 : index
    %0 = vector.load %arg1[%c0, %c0_0] : memref<8x1xi32, #tpu.memory_space<vmem>>, vector<8x1xi32>
    %c0_1 = arith.constant 0 : index
    %c0_2 = arith.constant 0 : index
    %1 = vector.load %arg3[%c0_1, %c0_2] : memref<4x32xf32, #tpu.memory_space<vmem>>, vector<1x32xf32>
    %2 = vector.shape_cast %1 : vector<1x32xf32> to vector<1x32xf32>
    %3 = vector.broadcast %2 : vector<1x32xf32> to vector<8x32xf32>
    %c1_i32 = arith.constant 1 : i32
    %4 = vector.broadcast %c1_i32 : i32 to vector<8x1xi32>
    %5 = arith.cmpi eq, %0, %4 : vector<8x1xi32>
    %c1 = arith.constant 1 : index
    %c0_3 = arith.constant 0 : index
    %6 = vector.load %arg3[%c1, %c0_3] : memref<4x32xf32, #tpu.memory_space<vmem>>, vector<1x32xf32>
    %7 = vector.shape_cast %5 : vector<8x1xi1> to vector<8x1xi1>
    %8 = vector.broadcast %7 : vector<8x1xi1> to vector<8x32xi1>
    %9 = vector.shape_cast %6 : vector<1x32xf32> to vector<1x32xf32>
    %10 = vector.broadcast %9 : vector<1x32xf32> to vector<8x32xf32>
    %11 = arith.select %8, %10, %3 : vector<8x32xi1>, vector<8x32xf32>
    %c2_i32 = arith.constant 2 : i32
    %12 = vector.broadcast %c2_i32 : i32 to vector<8x1xi32>
    %13 = arith.cmpi eq, %0, %12 : vector<8x1xi32>
    %c2 = arith.constant 2 : index
    %c0_4 = arith.constant 0 : index
    %14 = vector.load %arg3[%c2, %c0_4] : memref<4x32xf32, #tpu.memory_space<vmem>>, vector<1x32xf32>
    %15 = vector.shape_cast %13 : vector<8x1xi1> to vector<8x1xi1>
    %16 = vector.broadcast %15 : vector<8x1xi1> to vector<8x32xi1>
    %17 = vector.shape_cast %14 : vector<1x32xf32> to vector<1x32xf32>
    %18 = vector.broadcast %17 : vector<1x32xf32> to vector<8x32xf32>
    %19 = arith.select %16, %18, %11 : vector<8x32xi1>, vector<8x32xf32>
    %c3_i32 = arith.constant 3 : i32
    %20 = vector.broadcast %c3_i32 : i32 to vector<8x1xi32>
    %21 = arith.cmpi eq, %0, %20 : vector<8x1xi32>
    %c3 = arith.constant 3 : index
    %c0_5 = arith.constant 0 : index
    %22 = vector.load %arg3[%c3, %c0_5] : memref<4x32xf32, #tpu.memory_space<vmem>>, vector<1x32xf32>
    %23 = vector.shape_cast %21 : vector<8x1xi1> to vector<8x1xi1>
    %24 = vector.broadcast %23 : vector<8x1xi1> to vector<8x32xi1>
    %25 = vector.shape_cast %22 : vector<1x32xf32> to vector<1x32xf32>
    %26 = vector.broadcast %25 : vector<1x32xf32> to vector<8x32xf32>
    %27 = arith.select %24, %26, %19 : vector<8x32xi1>, vector<8x32xf32>
    %c0_6 = arith.constant 0 : index
    %c0_7 = arith.constant 0 : index
    %28 = vector.load %arg2[%c0_6, %c0_7] : memref<8x32xf32, #tpu.memory_space<vmem>>, vector<8x32xf32>
    %29 = vector.extract_strided_slice %28 {offsets = [0, 0], sizes = [8, 16], strides = [1, 1]} : vector<8x32xf32> to vector<8x16xf32>
    %30 = vector.extract_strided_slice %28 {offsets = [0, 16], sizes = [8, 16], strides = [1, 1]} : vector<8x32xf32> to vector<8x16xf32>
    %31 = vector.extract_strided_slice %27 {offsets = [0, 0], sizes = [8, 16], strides = [1, 1]} : vector<8x32xf32> to vector<8x16xf32>
    %32 = vector.extract_strided_slice %27 {offsets = [0, 16], sizes = [8, 16], strides = [1, 1]} : vector<8x32xf32> to vector<8x16xf32>
    %33 = arith.mulf %29, %31 : vector<8x16xf32>
    %34 = arith.mulf %30, %32 : vector<8x16xf32>
    %35 = arith.subf %33, %34 : vector<8x16xf32>
    %36 = arith.mulf %29, %32 : vector<8x16xf32>
    %37 = arith.mulf %30, %31 : vector<8x16xf32>
    %38 = arith.addf %36, %37 : vector<8x16xf32>
    %39 = tpu.concatenate %35, %38 in 1 : vector<8x16xf32>, vector<8x16xf32> -> vector<8x32xf32>
    %c0_8 = arith.constant 0 : index
    %c0_9 = arith.constant 0 : index
    %40 = vector.load %arg4[%c0_8, %c0_9] : memref<8x32xf32, #tpu.memory_space<vmem>>, vector<8x32xf32>
    tpu.vector_store %arg4[%c0_8, %c0_9], %39 {strides = array<i32>} : memref<8x32xf32, #tpu.memory_space<vmem>>, vector<8x32xf32>,
    return
  }
  func.func @transform_0(%arg0: i32) -> (i32, i32) {
    %c0_i32 = arith.constant 0 : i32
    %c0_i32_0 = arith.constant 0 : i32
    return %arg0, %c0_i32 : i32, i32
  }
  func.func @transform_1(%arg0: i32) -> (i32, i32) {
    %c0_i32 = arith.constant 0 : i32
    %c0_i32_0 = arith.constant 0 : i32
    return %arg0, %c0_i32 : i32, i32
  }
  func.func @transform_2(%arg0: i32) -> (i32, i32) {
    %c0_i32 = arith.constant 0 : i32
    %c0_i32_0 = arith.constant 0 : i32
    %c0_i32_1 = arith.constant 0 : i32
    return %c0_i32, %c0_i32_0 : i32, i32
  }
  func.func @transform_3(%arg0: i32) -> (i32, i32) {
    %c0_i32 = arith.constant 0 : i32
    %c0_i32_0 = arith.constant 0 : i32
    return %arg0, %c0_i32 : i32, i32
  }
}

</mosaic_0001>

<llo_original>
// kernel: tpu_custom_call.1
$region0: #{tpu_custom_call.1}
  #allocation0 [shape = 'u32[]', space=smem, size = 0x4, offset = 0x4, fixed_abs, tag = 'smem constant byte address 0x4 - core index']
  #allocation1 [shape = 'u32[144,128]{1,0:T(1,128)}', space=vmem, size = 0x12000, scoped, tag = 'internal scratch']
  %s0 = inlined_call_operand.vmem [shape: s32[16,1], index: 0, kind: input, shape index: {}]
  %s1 = inlined_call_operand.vmem [shape: f32[16,32], index: 1, kind: input, shape index: {}]
  %s2 = inlined_call_operand.vmem [shape: f32[4,32], index: 2, kind: input, shape index: {}]
  %s3 = inlined_call_operand.hbm [shape: f32[16,32], index: 3, kind: output, shape index: {}]
  %s4 = sld [smem:[#allocation0]]
  $region45: #{tpu_custom_call.1} parent=0
    _
  %s6 = ssub.s32 1, %s4
  %s7 = scalar_select 0, %s6, %s4
  $region1: #{tpu_custom_call.1} parent=0
    #allocation2 [shape = 'u8[8192]{0}', space=vmem, size = 0x2000, scoped, tag = 'output window, operand 0']
    #allocation3 [shape = 's32[2]{0}', space=sflag, size = 0x8, scoped, tag = 'scoped memory for tpu_custom_call.1']
    %8 = vsyncpa [#allocation3], 0
    %s9 = scalar_lea.sflag [#allocation3], 1
    %10 = vsyncpa %s9, 0
    loop: start=0, step=1, limit=4
    $region2: #{tpu_custom_call.1} parent=1 // loop_pre_header
      _
    $region3: #{tpu_custom_call.1} parent=1 // loop_header
      %s12 = sphi 0, %s16
      %p13 = scmp.ge.s32.totalorder %s12, 4
      %s22 = sphi 0, %s24
      %s25 = sphi 0, %s22
      %s26 = sphi 0, %s25
      %s42 = sphi 0, %s26
      %s48 = sphi 0, %s50
      %s51 = sphi 0, %s48
      %s52 = sphi 0, %s51
      %s68 = sphi 0, %s52
      %s72 = sphi 0, %s72
      %s74 = sphi 0, %s72
      %s75 = sphi 0, %s74
      %s89 = sphi 0, %s75
      %s95 = sphi 0, %s97
      %s98 = sphi 0, %s95
      %s99 = sphi 0, %s98
      %s115 = sphi 0, %s99
    $region4: #{tpu_custom_call.1} parent=1 // loop_header_branch
      %15 = sbr.rel (%p13) target = $region8
    $region5: #{tpu_custom_call.1} parent=1 // loop_body
      %s17 = ssub.s32 %s12, 1
      %s18 = ssub.s32 %s12, 2
      %s19 = sadd.s32 %s12, 1
      %s20 = ssub.s32 %s12, %s19
      %p21 = scmp.eq.s32.totalorder %s20, 0
      %s23 = sadd.s32 %s22, 1
      %s24 = scalar_select %p21, %s22, %s23
      %p27 = pneg %p21
      %p28 = scmp.eq.s32.totalorder %s12, 1
      %p29 = por %p27, %p28
      %p30 = scmp.ne.s32.totalorder %s22, %s25
      %p31 = scmp.eq.s32.totalorder %s12, 0
      %p32 = por %p30, %p31
      %p33 = scmp.ne.s32.totalorder %s22, %s25
      %p34 = scmp.eq.s32.totalorder %s17, 1
      %p35 = por %p33, %p34
      %p36 = scmp.ne.s32.totalorder %s25, %s26
      %p37 = scmp.eq.s32.totalorder %s17, 0
      %p38 = por %p36, %p37
      %p39 = scmp.ne.s32.totalorder %s25, %s26
      %p40 = scmp.eq.s32.totalorder %s18, 1
      %p41 = por %p39, %p40
      %p43 = scmp.ne.s32.totalorder %s26, %s42
      %p44 = scmp.eq.s32.totalorder %s18, 0
      %p45 = por %p43, %p44
      %s46 = ssub.s32 %s12, %s19
      %p47 = scmp.eq.s32.totalorder %s46, 0
      %s49 = sadd.s32 %s48, 1
      %s50 = scalar_select %p47, %s48, %s49
      %p53 = pneg %p47
      %p54 = scmp.eq.s32.totalorder %s12, 1
      %p55 = por %p53, %p54
      %p56 = scmp.ne.s32.totalorder %s48, %s51
      %p57 = scmp.eq.s32.totalorder %s12, 0
      %p58 = por %p56, %p57
      %p59 = scmp.ne.s32.totalorder %s48, %s51
      %p60 = scmp.eq.s32.totalorder %s17, 1
      %p61 = por %p59, %p60
      %p62 = scmp.ne.s32.totalorder %s51, %s52
      %p63 = scmp.eq.s32.totalorder %s17, 0
      %p64 = por %p62, %p63
      %p65 = scmp.ne.s32.totalorder %s51, %s52
      %p66 = scmp.eq.s32.totalorder %s18, 1
      %p67 = por %p65, %p66
      %p69 = scmp.ne.s32.totalorder %s52, %s68
      %p70 = scmp.eq.s32.totalorder %s18, 0
      %p71 = por %p69, %p70
      %s73 = sadd.s32 %s72, 1
      %p76 = scmp.eq.s32.totalorder %s12, 1
      %p77 = scmp.ne.s32.totalorder %s72, %s74
      %p78 = scmp.eq.s32.totalorder %s12, 0
      %p79 = por %p77, %p78
      %p80 = scmp.ne.s32.totalorder %s72, %s74
      %p81 = scmp.eq.s32.totalorder %s17, 1
      %p82 = por %p80, %p81
      %p83 = scmp.ne.s32.totalorder %s74, %s75
      %p84 = scmp.eq.s32.totalorder %s17, 0
      %p85 = por %p83, %p84
      %p86 = scmp.ne.s32.totalorder %s74, %s75
      %p87 = scmp.eq.s32.totalorder %s18, 1
      %p88 = por %p86, %p87
      %p90 = scmp.ne.s32.totalorder %s75, %s89
      %p91 = scmp.eq.s32.totalorder %s18, 0
      %p92 = por %p90, %p91
      %s93 = ssub.s32 %s12, %s19
      %p94 = scmp.eq.s32.totalorder %s93, 0
      %s96 = sadd.s32 %s95, 1
      %s97 = scalar_select %p94, %s95, %s96
      %p100 = pneg %p94
      %p101 = scmp.eq.s32.totalorder %s12, 1
      %p102 = por %p100, %p101
      %p103 = scmp.ne.s32.totalorder %s95, %s98
      %p104 = scmp.eq.s32.totalorder %s12, 0
      %p105 = por %p103, %p104
      %p106 = scmp.ne.s32.totalorder %s95, %s98
      %p107 = scmp.eq.s32.totalorder %s17, 1
      %p108 = por %p106, %p107
      %p109 = scmp.ne.s32.totalorder %s98, %s99
      %p110 = scmp.eq.s32.totalorder %s17, 0
      %p111 = por %p109, %p110
      %p112 = scmp.ne.s32.totalorder %s98, %s99
      %p113 = scmp.eq.s32.totalorder %s18, 1
      %p114 = por %p112, %p113
      %p116 = scmp.ne.s32.totalorder %s99, %s115
      %p117 = scmp.eq.s32.totalorder %s18, 0
      %p118 = por %p116, %p117
      %p119 = scmp.le.s32.totalorder 1, %s12
      %p120 = scmp.lt.s32.totalorder %s12, 3
      %p121 = pnand %p119, %p120
      %p122 = pneg %p121
      // Predicated region
      $region9: #{tpu_custom_call.1} parent=5 // pred_check
        _
      $region10: #{tpu_custom_call.1} parent=5 // pred_check_branch
        %124 = sbr.rel (%p121) target = $region12
      $region11: #{tpu_custom_call.1} parent=5 // pred_region
        %s125 = ssub.s32 %s12, 1
        // Predicated region
        $region13: #{tpu_custom_call.1} parent=11 // pred_check
          %p126 = pneg %p85
        $region14: #{tpu_custom_call.1} parent=11 // pred_check_branch
          %128 = sbr.rel (%p126) target = $region16
        $region15: #{tpu_custom_call.1} parent=11 // pred_region
          _
        $region16: #{tpu_custom_call.1} parent=11 // pred_fallthru
          _
      $region12: #{tpu_custom_call.1} parent=5 // pred_fallthru
        _
      %p129 = scmp.lt.s32.totalorder %s12, 2
      // Predicated region
      $region17: #{tpu_custom_call.1} parent=5 // pred_check
        %p130 = pneg %p129
      $region18: #{tpu_custom_call.1} parent=5 // pred_check_branch
        %132 = sbr.rel (%p130) target = $region20
      $region19: #{tpu_custom_call.1} parent=5 // pred_region
        // Predicated region
        $region21: #{tpu_custom_call.1} parent=19 // pred_check
          %p133 = pneg %p32
        $region22: #{tpu_custom_call.1} parent=19 // pred_check_branch
          %135 = sbr.rel (%p133) target = $region24
        $region23: #{tpu_custom_call.1} parent=19 // pred_region
          %p136 = scmp.lt.s32.totalorder %s12, 1
          %s137 = scalar_select %p136, %s12, 1
          %s138 = smul.addr %s137, 8
          %s139 = scalar_lea.vmem %s0, %s138
        $region24: #{tpu_custom_call.1} parent=19 // pred_fallthru
          _
        // Predicated region
        $region25: #{tpu_custom_call.1} parent=19 // pred_check
          %p140 = pneg %p58
        $region26: #{tpu_custom_call.1} parent=19 // pred_check_branch
          %142 = sbr.rel (%p140) target = $region28
        $region27: #{tpu_custom_call.1} parent=19 // pred_region
          %p143 = scmp.lt.s32.totalorder %s12, 1
          %s144 = scalar_select %p143, %s12, 1
          %s145 = smul.addr %s144, 8
          %s146 = scalar_lea.vmem %s1, %s145
        $region28: #{tpu_custom_call.1} parent=19 // pred_fallthru
          _
      $region20: #{tpu_custom_call.1} parent=5 // pred_fallthru
        _
      %p147 = scmp.le.s32.totalorder 1, %s12
      %p148 = scmp.lt.s32.totalorder %s12, 3
      %p149 = pnand %p147, %p148
      %p150 = pneg %p149
      // Predicated region
      $region29: #{tpu_custom_call.1} parent=5 // pred_check
        _
      $region30: #{tpu_custom_call.1} parent=5 // pred_check_branch
        %152 = sbr.rel (%p149) target = $region32
      $region31: #{tpu_custom_call.1} parent=5 // pred_region
        %s153 = ssub.s32 %s12, 1
        %p154 = scmp.lt.s32.totalorder %s17, 1
        %s155 = scalar_select %p154, %s17, 1
        %s156 = smul.addr %s155, 8
        %s157 = scalar_lea.vmem %s0, %s156
        %p158 = pneg %p38
        %p159 = pneg %p35
        %p160 = scmp.lt.s32.totalorder %s17, 1
        %s161 = scalar_select %p160, %s17, 1
        %s162 = smul.addr %s161, 8
        %s163 = scalar_lea.vmem %s1, %s162
        %p164 = pneg %p64
        %p165 = pneg %p61
        %p166 = pneg %p85
        %p167 = pneg %p82
        %p168 = pneg %p111
        %p169 = pneg %p108
        %s170 = sand.u32 %s98, 1
        %s171 = scalar_lea.sflag [#allocation3], %s170
        %s172 = sand.u32 %s98, 1
        %s173 = smul.addr %s172, 8
        %s174 = scalar_lea.vmem [#allocation2], %s173
        %p175 = scmp.lt.s32.totalorder %s17, 1
        %s176 = scalar_select %p175, %s17, 1
        %s177 = smul.addr %s176, 8
        %s178 = scalar_lea.vmem %s0, %s177
        %p179 = scmp.lt.s32.totalorder %s17, 1
        %s180 = scalar_select %p179, %s17, 1
        %s181 = smul.addr %s180, 8
        %s182 = scalar_lea.vmem %s1, %s181
        %v183 = vld [vmem:[%s178] sm:$0xff]
        %v184 = vld [vmem:[%s2] sm:$0x1]
        %v185 = vlaneseq
        %v186 = vshrl.u32 %v185, 7
        %v187 = vsub.s32 0, %v186
        %v188 = vrot.slane %v184, %v187
        %vm189 = vcmp.eq.s32.totalorder %v183, 1
        %v190 = vld [vmem:[%s2 + $0x1] sm:$0x1]
        %v191 = vsel %vm189, 1, 0
        %192 = vset.pattern.permute.xlu0 0
        %193 = vperm.xlu0 %192, %v191
        %v194 = vpop.permute.xlu0 %193
        %vm195 = vcmp.eq.s32.totalorder %v194, 1
        %v196 = vlaneseq
        %v197 = vshrl.u32 %v196, 7
        %v198 = vsub.s32 0, %v197
        %v199 = vrot.slane %v190, %v198
        %v200 = vsel %vm195, %v199, %v188
        %vm201 = vcmp.eq.s32.totalorder %v183, 2
        %v202 = vld [vmem:[%s2 + $0x2] sm:$0x1]
        %v203 = vsel %vm201, 1, 0
        %204 = vset.pattern.permute.xlu0 0
        %205 = vperm.xlu0 %204, %v203
        %v206 = vpop.permute.xlu0 %205
        %vm207 = vcmp.eq.s32.totalorder %v206, 1
        %v208 = vlaneseq
        %v209 = vshrl.u32 %v208, 7
        %v210 = vsub.s32 0, %v209
        %v211 = vrot.slane %v202, %v210
        %v212 = vsel %vm207, %v211, %v200
        %vm213 = vcmp.eq.s32.totalorder %v183, 3
        %v214 = vld [vmem:[%s2 + $0x3] sm:$0x1]
        %v215 = vsel %vm213, 1, 0
        %216 = vset.pattern.permute.xlu0 0
        %217 = vperm.xlu0 %216, %v215
        %v218 = vpop.permute.xlu0 %217
        %vm219 = vcmp.eq.s32.totalorder %v218, 1
        %v220 = vlaneseq
        %v221 = vshrl.u32 %v220, 7
        %v222 = vsub.s32 0, %v221
        %v223 = vrot.slane %v214, %v222
        %v224 = vsel %vm219, %v223, %v212
        %v225 = vld [vmem:[%s182] sm:$0xff]
        %v226 = vmul.f32 %v225, %v224
        %228 = vrot.lane.b32.xlu0 %v226, 112
        %v229 = vpop.permute.xlu0 %228
        %v231 = vsub.f32 %v226, %v229
        %233 = vrot.lane.b32.xlu0 %v224, 112
        %v234 = vpop.permute.xlu0 %233
        %v236 = vmul.f32 %v225, %v234
        %237 = vrot.lane.b32.xlu0 %v224, 16
        %v238 = vpop.permute.xlu0 %237
        %v240 = vmul.f32 %v225, %v238
        %242 = vrot.lane.b32.xlu0 %v240, 112
        %v243 = vpop.permute.xlu0 %242
        %v245 = vadd.f32 %v236, %v243
        %247 = vrot.lane.b32.xlu0 %v245, 16
        %v248 = vpop.permute.xlu0 %247
        %vm250 = vcmask 130048
        %v251 = vsel %vm250, %v231, %v248
        %vm252 = vcmask 261120
        %253 = vst.msk [vmem:[%s174] sm:$0xff] %vm252, %v251
        %s254 = sand.u32 %s98, 1
        %s255 = scalar_lea.sflag [#allocation3], %s254
        %s256 = sand.u32 %s98, 1
        %s257 = smul.addr %s256, 8
        %s258 = scalar_lea.vmem [#allocation2], %s257
        // Predicated region
        $region33: #{tpu_custom_call.1} parent=31 // pred_check
          %p259 = pneg %p108
        $region34: #{tpu_custom_call.1} parent=31 // pred_check_branch
          %261 = sbr.rel (%p259) target = $region36
        $region35: #{tpu_custom_call.1} parent=31 // pred_region
          %s263 = ssub.s32 128, 128
          %264 = vsyncadd %s255, %s263
          %s265 = smul.addr %s17, 128
          %s266 = scalar_lea.hbm %s3, %s265
          %s268 = sshll.u32 %s258, 4
          %s269 = int_to_ptr.vmem [resolvable:$true] %s268
          %271 = dma.vmem_to_hbm [thread:$0]  %s269, 128, %s266, %s255
        $region36: #{tpu_custom_call.1} parent=31 // pred_fallthru
          _
      $region32: #{tpu_custom_call.1} parent=5 // pred_fallthru
        _
      %p272 = scmp.le.s32.totalorder 2, %s12
      // Predicated region
      $region37: #{tpu_custom_call.1} parent=5 // pred_check
        %p273 = pneg %p272
      $region38: #{tpu_custom_call.1} parent=5 // pred_check_branch
        %275 = sbr.rel (%p273) target = $region40
      $region39: #{tpu_custom_call.1} parent=5 // pred_region
        %s276 = ssub.s32 %s12, 2
        // Predicated region
        $region41: #{tpu_custom_call.1} parent=39 // pred_check
          %p277 = pneg %p114
        $region42: #{tpu_custom_call.1} parent=39 // pred_check_branch
          %279 = sbr.rel (%p277) target = $region44
        $region43: #{tpu_custom_call.1} parent=39 // pred_region
          %s280 = sand.u32 %s99, 1
          %s281 = scalar_lea.sflag [#allocation3], %s280
          %s282 = sand.u32 %s99, 1
          %s283 = smul.addr %s282, 8
          %s284 = scalar_lea.vmem [#allocation2], %s283
          %285 = dma.done %s281, 128
        $region44: #{tpu_custom_call.1} parent=39 // pred_fallthru
          _
      $region40: #{tpu_custom_call.1} parent=5 // pred_fallthru
        _
    $region6: #{tpu_custom_call.1} parent=1 // loop_footer
      %s16 = sadd.s32 1, %s12
    $region7: #{tpu_custom_call.1} parent=1 // loop_footer_branch
      %11 = sbr.rel target = $region3
    $region8: #{tpu_custom_call.1} parent=1 // loop_exit
      _
    %286 = vsyncpa [#allocation3], 1
    %s287 = scalar_lea.sflag [#allocation3], 1
    %288 = vsyncpa %s287, 1

</llo_original>
